<compile_context>
chip_gen: v6e
topology: v6e:2x2x1
jax: 0.10.0
libtpu: 0.0.40
codegen_flags: <defaults>
</compile_context>

<pallas_src>
import jax
import jax.numpy as jnp
from jax.experimental import pallas as pl
from jax.experimental.pallas import tpu as pltpu


def _round_up(x, m):
    return (x + m - 1) // m * m


def _mlp_kernel(x_ref,
                w1_ref, b1_ref,
                w2_ref, b2_ref,
                w3_ref, b3_ref,
                w4_ref, b4_ref,
                w5_ref, b5_ref,
                o_ref):
    # Activations are (features, batch): batch on lanes, features on sublanes.
    x = x_ref[...].astype(jnp.bfloat16)                                    # (16, TB)
    h = jnp.dot(w1_ref[...].astype(jnp.bfloat16), x,
                preferred_element_type=jnp.float32)                        # (128, TB) f32
    h = jnp.maximum(h + b1_ref[...], 0.0)
    h = jnp.dot(w2_ref[...].astype(jnp.bfloat16), h.astype(jnp.bfloat16),
                preferred_element_type=jnp.float32)                        # (64, TB)
    h = jnp.maximum(h + b2_ref[...], 0.0)
    h = jnp.dot(w3_ref[...].astype(jnp.bfloat16), h.astype(jnp.bfloat16),
                preferred_element_type=jnp.float32)                        # (32, TB)
    h = jnp.maximum(h + b3_ref[...], 0.0)
    h = jnp.dot(w4_ref[...].astype(jnp.bfloat16), h.astype(jnp.bfloat16),
                preferred_element_type=jnp.float32)                        # (16, TB)
    h = jnp.maximum(h + b4_ref[...], 0.0)
    # Final 16 -> 1 layer: VPU broadcast-multiply + sublane reduce in f32 (no
    # N=1 MXU pass); produces a lane-dense (1, TB) store.
    out = jnp.sum(w5_ref[...] * h, axis=0, keepdims=True) + b5_ref[...]    # (1, TB)
    o_ref[...] = out.astype(o_ref.dtype)


def max_temperature_nn(x, params, *, block_batch=1024):
    """Forward pass of MaxTemperatureNN.

    x:      (B, 13) float32, torch.nn.Linear-style (batch, features) input.
    params: list of (W, b) in torch layout: W (out_features, in_features), b (out_features,).
    Returns (B, 1) float32.
    """
    B, in_dim = x.shape
    n_layers = len(params)

    # Batch tile lives on the lane axis -> multiple of 128; large tiles amortize
    # the ~0.35 us per-grid-step overhead.
    TB = min(_round_up(block_batch, 128), _round_up(B, 128))
    Bp = _round_up(B, TB)
    in_pad = _round_up(in_dim, 8)   # pad the 13-wide contraction of layer 1

    # Transposed, zero-padded input: (features, batch) with batch on lanes.
    xt = jnp.zeros((in_pad, Bp), jnp.float32).at[:in_dim, :B].set(x.T)

    flat_params = []
    in_specs = [pl.BlockSpec((in_pad, TB), lambda i: (0, i))]
    for li, (w, b) in enumerate(params):
        w = w.astype(jnp.float32)
        b = b.astype(jnp.float32)
        if li == 0:
            out_f, in_f = w.shape
            w = jnp.zeros((out_f, in_pad), jnp.float32).at[:, :in_f].set(w)
        if li == n_layers - 1:
            w = w.T  # (16, 1): consumed via VPU broadcast-mul + sublane sum
        b2d = b.reshape(-1, 1)
        flat_params.extend([w, b2d])
        # Weights/biases: full resident blocks with constant index maps -> DMA'd once.
        in_specs.append(pl.BlockSpec(w.shape, lambda i: (0, 0)))
        in_specs.append(pl.BlockSpec(b2d.shape, lambda i: (0, 0)))

    out_t = pl.pallas_call(
        _mlp_kernel,
        out_shape=jax.ShapeDtypeStruct((1, Bp), jnp.float32),
        grid=(Bp // TB,),
        in_specs=in_specs,
        out_specs=pl.BlockSpec((1, TB), lambda i: (0, i)),
        compiler_params=pltpu.CompilerParams(
            dimension_semantics=("parallel",),     # v7x: shard batch grid over 2 TCs
            vmem_limit_bytes=32 * 1024 * 1024,     # explicit budget, safe on v7x 64 MiB
        ),
    )(xt, *flat_params)

    return out_t[:, :B].T                                                  # (B, 1)


def init_params(key, input_dim=13, output_dim=1):
    """torch.nn.Linear default init; torch layout W (out, in), b (out,)."""
    dims = [input_dim, 128, 64, 32, 16, output_dim]
    params = []
    for i in range(len(dims) - 1):
        key, kw, kb = jax.random.split(key, 3)
        bound = 1.0 / (dims[i] ** 0.5)
        w = jax.random.uniform(kw, (dims[i + 1], dims[i]), jnp.float32, -bound, bound)
        b = jax.random.uniform(kb, (dims[i + 1],), jnp.float32, -bound, bound)
        params.append((w, b))
    return params


def _reference(x, params, *, matmul_dtype=jnp.float32):
    """Plain-JAX forward. matmul_dtype=bf16 mirrors the kernel's MXU precision."""
    h = x
    n = len(params)
    for i, (w, b) in enumerate(params):
        if i < n - 1:
            h = jnp.dot(h.astype(matmul_dtype), w.T.astype(matmul_dtype),
                        preferred_element_type=jnp.float32) + b
            h = jnp.maximum(h, 0.0)
        else:
            h = jnp.dot(h, w.T, preferred_element_type=jnp.float32) + b
    return h


if __name__ == "__main__":
    key = jax.random.PRNGKey(0)
    key, kx, kx2 = jax.random.split(key, 3)
    params = init_params(key)

    # Small test (single grid step).
    batch = 8
    x = jax.random.normal(kx, (batch, 13), dtype=jnp.float32)
    out = jax.block_until_ready(max_temperature_nn(x, params))
    assert out.shape == (batch, 1), out.shape
    ref_mixed = _reference(x, params, matmul_dtype=jnp.bfloat16)  # same MXU precision
    ref_f32 = _reference(x, params, matmul_dtype=jnp.float32)     # full-precision sanity
    assert jnp.allclose(out, ref_mixed, atol=1e-4, rtol=1e-4), (out, ref_mixed)
    assert jnp.allclose(out, ref_f32, atol=5e-2, rtol=5e-2), (out, ref_f32)

    # Multi-step grid + ragged batch (B not a multiple of the batch tile).
    batch2 = 300
    x2 = jax.random.normal(kx2, (batch2, 13), dtype=jnp.float32)
    out2 = jax.block_until_ready(max_temperature_nn(x2, params, block_batch=128))
    assert out2.shape == (batch2, 1), out2.shape
    ref2 = _reference(x2, params, matmul_dtype=jnp.bfloat16)
    assert jnp.allclose(out2, ref2, atol=1e-4, rtol=1e-4), (out2, ref2)

    print("KERNEL_OK")
</pallas_src>

<mosaic_0001>
module attributes {stable_mosaic.version = 11 : i64} {
  func.func @_mlp_kernel(%arg0: i32, %arg1: memref<16x128xf32, #tpu.memory_space<vmem>>, %arg2: memref<128x16xf32, #tpu.memory_space<vmem>>, %arg3: memref<128x1xf32, #tpu.memory_space<vmem>>, %arg4: memref<64x128xf32, #tpu.memory_space<vmem>>, %arg5: memref<64x1xf32, #tpu.memory_space<vmem>>, %arg6: memref<32x64xf32, #tpu.memory_space<vmem>>, %arg7: memref<32x1xf32, #tpu.memory_space<vmem>>, %arg8: memref<16x32xf32, #tpu.memory_space<vmem>>, %arg9: memref<16x1xf32, #tpu.memory_space<vmem>>, %arg10: memref<16x1xf32, #tpu.memory_space<vmem>>, %arg11: memref<1x1xf32, #tpu.memory_space<vmem>>, %arg12: memref<1x128xf32, #tpu.memory_space<vmem>>) attributes {dimension_semantics = [#tpu.dimension_semantics<parallel>], iteration_bounds = array<i64: 1>, scalar_prefetch = 0 : i64, scratch_operands = 0 : i64, tpu.core_type = #tpu.core_type<tc>, window_params = [{transform_indices = @transform_0, window_bounds = array<i64: 16, 128>}, {pipeline_mode = #tpu.pipeline_mode<synchronous>, transform_indices = @transform_1, window_bounds = array<i64: 128, 16>}, {pipeline_mode = #tpu.pipeline_mode<synchronous>, transform_indices = @transform_2, window_bounds = array<i64: 128, 1>}, {pipeline_mode = #tpu.pipeline_mode<synchronous>, transform_indices = @transform_3, window_bounds = array<i64: 64, 128>}, {pipeline_mode = #tpu.pipeline_mode<synchronous>, transform_indices = @transform_4, window_bounds = array<i64: 64, 1>}, {pipeline_mode = #tpu.pipeline_mode<synchronous>, transform_indices = @transform_5, window_bounds = array<i64: 32, 64>}, {pipeline_mode = #tpu.pipeline_mode<synchronous>, transform_indices = @transform_6, window_bounds = array<i64: 32, 1>}, {pipeline_mode = #tpu.pipeline_mode<synchronous>, transform_indices = @transform_7, window_bounds = array<i64: 16, 32>}, {pipeline_mode = #tpu.pipeline_mode<synchronous>, transform_indices = @transform_8, window_bounds = array<i64: 16, 1>}, {pipeline_mode = #tpu.pipeline_mode<synchronous>, transform_indices = @transform_9, window_bounds = array<i64: 16, 1>}, {pipeline_mode = #tpu.pipeline_mode<synchronous>, transform_indices = @transform_10, window_bounds = array<i64: 1, 1>}, {transform_indices = @transform_11, window_bounds = array<i64: 1, 128>}]} {
    %c0 = arith.constant 0 : index
    %c0_0 = arith.constant 0 : index
    %0 = vector.load %arg1[%c0, %c0_0] : memref<16x128xf32, #tpu.memory_space<vmem>>, vector<16x128xf32>
    %1 = arith.truncf %0 : vector<16x128xf32> to vector<16x128xbf16>
    %c0_1 = arith.constant 0 : index
    %c0_2 = arith.constant 0 : index
    %2 = vector.load %arg2[%c0_1, %c0_2] : memref<128x16xf32, #tpu.memory_space<vmem>>, vector<128x16xf32>
    %3 = arith.truncf %2 : vector<128x16xf32> to vector<128x16xbf16>
    %cst = arith.constant dense<0.000000e+00> : vector<128x128xf32>
    %4 = tpu.matmul %3, %1, %cst {dimension_numbers = #tpu.dot_dimension_numbers<[1], [0], [0], [1], [0, 0, 1, 1], [], []>} : vector<128x16xbf16>, vector<16x128xbf16>, vector<128x128xf32> -> vector<128x128xf32>
    %c0_3 = arith.constant 0 : index
    %c0_4 = arith.constant 0 : index
    %5 = vector.load %arg3[%c0_3, %c0_4] : memref<128x1xf32, #tpu.memory_space<vmem>>, vector<128x1xf32>
    %6 = vector.broadcast %5 : vector<128x1xf32> to vector<128x128xf32>
    %7 = arith.addf %4, %6 : vector<128x128xf32>
    %cst_5 = arith.constant 0.000000e+00 : f32
    %8 = vector.broadcast %cst_5 : f32 to vector<128x128xf32>
    %9 = arith.maximumf %7, %8 : vector<128x128xf32>
    %c0_6 = arith.constant 0 : index
    %c0_7 = arith.constant 0 : index
    %10 = vector.load %arg4[%c0_6, %c0_7] : memref<64x128xf32, #tpu.memory_space<vmem>>, vector<64x128xf32>
    %11 = arith.truncf %10 : vector<64x128xf32> to vector<64x128xbf16>
    %12 = arith.truncf %9 : vector<128x128xf32> to vector<128x128xbf16>
    %cst_8 = arith.constant dense<0.000000e+00> : vector<64x128xf32>
    %13 = tpu.matmul %11, %12, %cst_8 {dimension_numbers = #tpu.dot_dimension_numbers<[1], [0], [0], [1], [0, 0, 1, 1], [], []>} : vector<64x128xbf16>, vector<128x128xbf16>, vector<64x128xf32> -> vector<64x128xf32>
    %c0_9 = arith.constant 0 : index
    %c0_10 = arith.constant 0 : index
    %14 = vector.load %arg5[%c0_9, %c0_10] : memref<64x1xf32, #tpu.memory_space<vmem>>, vector<64x1xf32>
    %15 = vector.broadcast %14 : vector<64x1xf32> to vector<64x128xf32>
    %16 = arith.addf %13, %15 : vector<64x128xf32>
    %cst_11 = arith.constant 0.000000e+00 : f32
    %17 = vector.broadcast %cst_11 : f32 to vector<64x128xf32>
    %18 = arith.maximumf %16, %17 : vector<64x128xf32>
    %c0_12 = arith.constant 0 : index
    %c0_13 = arith.constant 0 : index
    %19 = vector.load %arg6[%c0_12, %c0_13] : memref<32x64xf32, #tpu.memory_space<vmem>>, vector<32x64xf32>
    %20 = arith.truncf %19 : vector<32x64xf32> to vector<32x64xbf16>
    %21 = arith.truncf %18 : vector<64x128xf32> to vector<64x128xbf16>
    %cst_14 = arith.constant dense<0.000000e+00> : vector<32x128xf32>
    %22 = tpu.matmul %20, %21, %cst_14 {dimension_numbers = #tpu.dot_dimension_numbers<[1], [0], [0], [1], [0, 0, 1, 1], [], []>} : vector<32x64xbf16>, vector<64x128xbf16>, vector<32x128xf32> -> vector<32x128xf32>
    %c0_15 = arith.constant 0 : index
    %c0_16 = arith.constant 0 : index
    %23 = vector.load %arg7[%c0_15, %c0_16] : memref<32x1xf32, #tpu.memory_space<vmem>>, vector<32x1xf32>
    %24 = vector.broadcast %23 : vector<32x1xf32> to vector<32x128xf32>
    %25 = arith.addf %22, %24 : vector<32x128xf32>
    %cst_17 = arith.constant 0.000000e+00 : f32
    %26 = vector.broadcast %cst_17 : f32 to vector<32x128xf32>
    %27 = arith.maximumf %25, %26 : vector<32x128xf32>
    %c0_18 = arith.constant 0 : index
    %c0_19 = arith.constant 0 : index
    %28 = vector.load %arg8[%c0_18, %c0_19] : memref<16x32xf32, #tpu.memory_space<vmem>>, vector<16x32xf32>
    %29 = arith.truncf %28 : vector<16x32xf32> to vector<16x32xbf16>
    %30 = arith.truncf %27 : vector<32x128xf32> to vector<32x128xbf16>
    %cst_20 = arith.constant dense<0.000000e+00> : vector<16x128xf32>
    %31 = tpu.matmul %29, %30, %cst_20 {dimension_numbers = #tpu.dot_dimension_numbers<[1], [0], [0], [1], [0, 0, 1, 1], [], []>} : vector<16x32xbf16>, vector<32x128xbf16>, vector<16x128xf32> -> vector<16x128xf32>
    %c0_21 = arith.constant 0 : index
    %c0_22 = arith.constant 0 : index
    %32 = vector.load %arg9[%c0_21, %c0_22] : memref<16x1xf32, #tpu.memory_space<vmem>>, vector<16x1xf32>
    %33 = vector.broadcast %32 : vector<16x1xf32> to vector<16x128xf32>
    %34 = arith.addf %31, %33 : vector<16x128xf32>
    %cst_23 = arith.constant 0.000000e+00 : f32
    %35 = vector.broadcast %cst_23 : f32 to vector<16x128xf32>
    %36 = arith.maximumf %34, %35 : vector<16x128xf32>
    %c0_24 = arith.constant 0 : index
    %c0_25 = arith.constant 0 : index
    %37 = vector.load %arg10[%c0_24, %c0_25] : memref<16x1xf32, #tpu.memory_space<vmem>>, vector<16x1xf32>
    %38 = vector.broadcast %37 : vector<16x1xf32> to vector<16x128xf32>
    %39 = arith.mulf %38, %36 : vector<16x128xf32>
    %cst_26 = arith.constant dense<0.000000e+00> : vector<128xf32>
    %40 = vector.multi_reduction <add>, %39, %cst_26 [0] : vector<16x128xf32> to vector<128xf32>
    %41 = vector.shape_cast %40 : vector<128xf32> to vector<1x128xf32>
    %c0_27 = arith.constant 0 : index
    %c0_28 = arith.constant 0 : index
    %42 = vector.load %arg11[%c0_27, %c0_28] : memref<1x1xf32, #tpu.memory_space<vmem>>, vector<1x1xf32>
    %43 = vector.broadcast %42 : vector<1x1xf32> to vector<1x128xf32>
    %44 = arith.addf %41, %43 : vector<1x128xf32>
    %c0_29 = arith.constant 0 : index
    %c0_30 = arith.constant 0 : index
    %45 = vector.load %arg12[%c0_29, %c0_30] : memref<1x128xf32, #tpu.memory_space<vmem>>, vector<1x128xf32>
    tpu.vector_store %arg12[%c0_29, %c0_30], %44 {strides = array<i32>} : memref<1x128xf32, #tpu.memory_space<vmem>>, vector<1x128xf32>,
    return
  }
  func.func @transform_0(%arg0: i32) -> (i32, i32) {
    %c0_i32 = arith.constant 0 : i32
    %c0_i32_0 = arith.constant 0 : i32
    return %c0_i32, %arg0 : i32, i32
  }
  func.func @transform_1(%arg0: i32) -> (i32, i32) {
    %c0_i32 = arith.constant 0 : i32
    %c0_i32_0 = arith.constant 0 : i32
    %c0_i32_1 = arith.constant 0 : i32
    return %c0_i32, %c0_i32_0 : i32, i32
  }
  func.func @transform_2(%arg0: i32) -> (i32, i32) {
    %c0_i32 = arith.constant 0 : i32
    %c0_i32_0 = arith.constant 0 : i32
    %c0_i32_1 = arith.constant 0 : i32
    return %c0_i32, %c0_i32_0 : i32, i32
  }
  func.func @transform_3(%arg0: i32) -> (i32, i32) {
    %c0_i32 = arith.constant 0 : i32
    %c0_i32_0 = arith.constant 0 : i32
    %c0_i32_1 = arith.constant 0 : i32
    return %c0_i32, %c0_i32_0 : i32, i32
  }
  func.func @transform_4(%arg0: i32) -> (i32, i32) {
    %c0_i32 = arith.constant 0 : i32
    %c0_i32_0 = arith.constant 0 : i32
    %c0_i32_1 = arith.constant 0 : i32
    return %c0_i32, %c0_i32_0 : i32, i32
  }
  func.func @transform_5(%arg0: i32) -> (i32, i32) {
    %c0_i32 = arith.constant 0 : i32
    %c0_i32_0 = arith.constant 0 : i32
    %c0_i32_1 = arith.constant 0 : i32
    return %c0_i32, %c0_i32_0 : i32, i32
  }
  func.func @transform_6(%arg0: i32) -> (i32, i32) {
    %c0_i32 = arith.constant 0 : i32
    %c0_i32_0 = arith.constant 0 : i32
    %c0_i32_1 = arith.constant 0 : i32
    return %c0_i32, %c0_i32_0 : i32, i32
  }
  func.func @transform_7(%arg0: i32) -> (i32, i32) {
    %c0_i32 = arith.constant 0 : i32
    %c0_i32_0 = arith.constant 0 : i32
    %c0_i32_1 = arith.constant 0 : i32
    return %c0_i32, %c0_i32_0 : i32, i32
  }
  func.func @transform_8(%arg0: i32) -> (i32, i32) {
    %c0_i32 = arith.constant 0 : i32
    %c0_i32_0 = arith.constant 0 : i32
    %c0_i32_1 = arith.constant 0 : i32
    return %c0_i32, %c0_i32_0 : i32, i32
  }
  func.func @transform_9(%arg0: i32) -> (i32, i32) {
    %c0_i32 = arith.constant 0 : i32
    %c0_i32_0 = arith.constant 0 : i32
    %c0_i32_1 = arith.constant 0 : i32
    return %c0_i32, %c0_i32_0 : i32, i32
  }
  func.func @transform_10(%arg0: i32) -> (i32, i32) {
    %c0_i32 = arith.constant 0 : i32
    %c0_i32_0 = arith.constant 0 : i32
    %c0_i32_1 = arith.constant 0 : i32
    return %c0_i32, %c0_i32_0 : i32, i32
  }
  func.func @transform_11(%arg0: i32) -> (i32, i32) {
    %c0_i32 = arith.constant 0 : i32
    %c0_i32_0 = arith.constant 0 : i32
    return %c0_i32, %arg0 : i32, i32
  }
}

</mosaic_0001>

<llo_original>
// kernel: tpu_custom_call.1
$region0: #{tpu_custom_call.1}
  #allocation0 [shape = 'u32[]', space=smem, size = 0x4, offset = 0x4, fixed_abs, tag = 'smem constant byte address 0x4 - core index']
  #allocation1 [shape = 'u32[144,128]{1,0:T(1,128)}', space=vmem, size = 0x12000, scoped, tag = 'internal scratch']
  #allocation2 [shape = 'f32[1,1]{1,0:T(1,128)S(1)}', space=vmem, size = 0x200, scoped, tag = 'scoped memory for tpu_custom_call.1']
  %s0 = inlined_call_operand.vmem [shape: f32[16,128], index: 0, kind: input, shape index: {}]
  %s1 = inlined_call_operand.vmem [shape: f32[128,16], index: 1, kind: input, shape index: {}]
  %s2 = inlined_call_operand.vmem [shape: f32[128,1], index: 2, kind: input, shape index: {}]
  %s3 = inlined_call_operand.vmem [shape: f32[64,128], index: 3, kind: input, shape index: {}]
  %s4 = inlined_call_operand.vmem [shape: f32[64,1], index: 4, kind: input, shape index: {}]
  %s5 = inlined_call_operand.vmem [shape: f32[32,64], index: 5, kind: input, shape index: {}]
  %s6 = inlined_call_operand.vmem [shape: f32[32,1], index: 6, kind: input, shape index: {}]
  %s7 = inlined_call_operand.vmem [shape: f32[16,32], index: 7, kind: input, shape index: {}]
  %s8 = inlined_call_operand.vmem [shape: f32[16,1], index: 8, kind: input, shape index: {}]
  %s9 = inlined_call_operand.vmem [shape: f32[16,1], index: 9, kind: input, shape index: {}]
  %s10 = inlined_call_operand.<no memory space> [shape: f32[1,1], index: 10, kind: input, shape index: {}]
  %s11 = inlined_call_operand.hbm [shape: f32[1,128], index: 11, kind: output, shape index: {}]
  %s12 = sld [smem:[#allocation0]]
  $region54: #{tpu_custom_call.1} parent=0
    _
  %s14 = ssub.s32 1, %s12
  %s15 = scalar_select 0, %s14, %s12
  %v16 = vstv %s10
  %17 = vst [vmem:[#allocation2] sm:$0x1] %v16
  $region1: #{tpu_custom_call.1} parent=0
    #allocation3 [shape = 'u8[512]{0}', space=vmem, size = 0x400, scoped, tag = 'output window, operand 0, single buffered']
    #allocation4 [shape = 's32[1]{0}', space=sflag, size = 0x4, scoped, tag = 'scoped memory for tpu_custom_call.1']
    %18 = vsyncpa [#allocation4], 0
    // Predicated region
    $region2: #{tpu_custom_call.1} parent=1 // pred_check
      _
    $region3: #{tpu_custom_call.1} parent=1 // pred_check_branch
      %20 = sbr.rel (0) target = $region5
    $region4: #{tpu_custom_call.1} parent=1 // pred_region
      _
    $region5: #{tpu_custom_call.1} parent=1 // pred_fallthru
      _
    // Predicated region
    $region6: #{tpu_custom_call.1} parent=1 // pred_check
      _
    $region7: #{tpu_custom_call.1} parent=1 // pred_check_branch
      %22 = sbr.rel (0) target = $region9
    $region8: #{tpu_custom_call.1} parent=1 // pred_region
      _
    $region9: #{tpu_custom_call.1} parent=1 // pred_fallthru
      _
    // Predicated region
    $region10: #{tpu_custom_call.1} parent=1 // pred_check
      _
    $region11: #{tpu_custom_call.1} parent=1 // pred_check_branch
      %24 = sbr.rel (0) target = $region13
    $region12: #{tpu_custom_call.1} parent=1 // pred_region
      _
    $region13: #{tpu_custom_call.1} parent=1 // pred_fallthru
      _
    // Predicated region
    $region14: #{tpu_custom_call.1} parent=1 // pred_check
      _
    $region15: #{tpu_custom_call.1} parent=1 // pred_check_branch
      %26 = sbr.rel (0) target = $region17
    $region16: #{tpu_custom_call.1} parent=1 // pred_region
      _
    $region17: #{tpu_custom_call.1} parent=1 // pred_fallthru
      _
    // Predicated region
    $region18: #{tpu_custom_call.1} parent=1 // pred_check
      _
    $region19: #{tpu_custom_call.1} parent=1 // pred_check_branch
      %28 = sbr.rel (0) target = $region21
    $region20: #{tpu_custom_call.1} parent=1 // pred_region
      _
    $region21: #{tpu_custom_call.1} parent=1 // pred_fallthru
      _
    // Predicated region
    $region22: #{tpu_custom_call.1} parent=1 // pred_check
      _
    $region23: #{tpu_custom_call.1} parent=1 // pred_check_branch
      %30 = sbr.rel (0) target = $region25
    $region24: #{tpu_custom_call.1} parent=1 // pred_region
      _
    $region25: #{tpu_custom_call.1} parent=1 // pred_fallthru
      _
    // Predicated region
    $region26: #{tpu_custom_call.1} parent=1 // pred_check
      _
    $region27: #{tpu_custom_call.1} parent=1 // pred_check_branch
      %32 = sbr.rel (0) target = $region29
    $region28: #{tpu_custom_call.1} parent=1 // pred_region
      _
    $region29: #{tpu_custom_call.1} parent=1 // pred_fallthru
      _
    // Predicated region
    $region30: #{tpu_custom_call.1} parent=1 // pred_check
      _
    $region31: #{tpu_custom_call.1} parent=1 // pred_check_branch
      %34 = sbr.rel (0) target = $region33
    $region32: #{tpu_custom_call.1} parent=1 // pred_region
      _
    $region33: #{tpu_custom_call.1} parent=1 // pred_fallthru
      _
    // Predicated region
    $region34: #{tpu_custom_call.1} parent=1 // pred_check
      _
    $region35: #{tpu_custom_call.1} parent=1 // pred_check_branch
      %36 = sbr.rel (0) target = $region37
    $region36: #{tpu_custom_call.1} parent=1 // pred_region
      _
    $region37: #{tpu_custom_call.1} parent=1 // pred_fallthru
      _
    // Predicated region
    $region38: #{tpu_custom_call.1} parent=1 // pred_check
      _
    $region39: #{tpu_custom_call.1} parent=1 // pred_check_branch
      %38 = sbr.rel (0) target = $region41
    $region40: #{tpu_custom_call.1} parent=1 // pred_region
      _
    $region41: #{tpu_custom_call.1} parent=1 // pred_fallthru
      _
    // Predicated region
    $region42: #{tpu_custom_call.1} parent=1 // pred_check
      _
    $region43: #{tpu_custom_call.1} parent=1 // pred_check_branch
      %40 = sbr.rel (0) target = $region45
    $region44: #{tpu_custom_call.1} parent=1 // pred_region
      _
    $region45: #{tpu_custom_call.1} parent=1 // pred_fallthru
      _
    %v42 = vld [vmem:[%s0] sm:$0xff]
    %v43 = vld [vmem:[%s0 + $0x8] sm:$0xff]
    %v44 = vpack.c.bf16 %v43, %v42
    %v45 = vld [vmem:[%s1] sm:$0xff]
    %v46 = vld [vmem:[%s1 + $0x8] sm:$0xff]
    %v47 = vld [vmem:[%s1 + $0x10] sm:$0xff]
    %v48 = vld [vmem:[%s1 + $0x18] sm:$0xff]
    %v49 = vld [vmem:[%s1 + $0x20] sm:$0xff]
    %v50 = vld [vmem:[%s1 + $0x28] sm:$0xff]
    %v51 = vld [vmem:[%s1 + $0x30] sm:$0xff]
    %v52 = vld [vmem:[%s1 + $0x38] sm:$0xff]
    %v53 = vld [vmem:[%s1 + $0x40] sm:$0xff]
    %v54 = vld [vmem:[%s1 + $0x48] sm:$0xff]
    %v55 = vld [vmem:[%s1 + $0x50] sm:$0xff]
    %v56 = vld [vmem:[%s1 + $0x58] sm:$0xff]
    %v57 = vld [vmem:[%s1 + $0x60] sm:$0xff]
    %v58 = vld [vmem:[%s1 + $0x68] sm:$0xff]
    %v59 = vld [vmem:[%s1 + $0x70] sm:$0xff]
    %v60 = vld [vmem:[%s1 + $0x78] sm:$0xff]
    %v61 = vpack.c.bf16 %v46, %v45
    %v62 = vpack.c.bf16 %v48, %v47
    %v63 = vpack.c.bf16 %v50, %v49
    %v64 = vpack.c.bf16 %v52, %v51
    %v65 = vpack.c.bf16 %v54, %v53
    %v66 = vpack.c.bf16 %v56, %v55
    %v67 = vpack.c.bf16 %v58, %v57
    %v68 = vpack.c.bf16 %v60, %v59
    %v69 = vld [vmem:[%s2] sm:$0xff]
    %v70 = vld [vmem:[%s2 + $0x8] sm:$0xff]
    %v71 = vld [vmem:[%s2 + $0x10] sm:$0xff]
    %v72 = vld [vmem:[%s2 + $0x18] sm:$0xff]
    %v73 = vld [vmem:[%s2 + $0x20] sm:$0xff]
    %v74 = vld [vmem:[%s2 + $0x28] sm:$0xff]
    %v75 = vld [vmem:[%s2 + $0x30] sm:$0xff]
    %v76 = vld [vmem:[%s2 + $0x38] sm:$0xff]
    %v77 = vld [vmem:[%s2 + $0x40] sm:$0xff]
    %v78 = vld [vmem:[%s2 + $0x48] sm:$0xff]
    %v79 = vld [vmem:[%s2 + $0x50] sm:$0xff]
    %v80 = vld [vmem:[%s2 + $0x58] sm:$0xff]
    %v81 = vld [vmem:[%s2 + $0x60] sm:$0xff]
    %v82 = vld [vmem:[%s2 + $0x68] sm:$0xff]
    %v83 = vld [vmem:[%s2 + $0x70] sm:$0xff]
    %v84 = vld [vmem:[%s2 + $0x78] sm:$0xff]
    %86 = vset.pattern.permute.xlu0 0
    %87 = vperm.xlu0 %86, %v69
    %v88 = vpop.permute.xlu0 %87
    %91 = vset.pattern.permute.xlu0 0
    %92 = vperm.xlu0 %91, %v70
    %v93 = vpop.permute.xlu0 %92
    %96 = vset.pattern.permute.xlu0 0
    %97 = vperm.xlu0 %96, %v71
    %v98 = vpop.permute.xlu0 %97
    %101 = vset.pattern.permute.xlu0 0
    %102 = vperm.xlu0 %101, %v72
    %v103 = vpop.permute.xlu0 %102
    %106 = vset.pattern.permute.xlu0 0
    %107 = vperm.xlu0 %106, %v73
    %v108 = vpop.permute.xlu0 %107
    %111 = vset.pattern.permute.xlu0 0
    %112 = vperm.xlu0 %111, %v74
    %v113 = vpop.permute.xlu0 %112
    %116 = vset.pattern.permute.xlu0 0
    %117 = vperm.xlu0 %116, %v75
    %v118 = vpop.permute.xlu0 %117
    %121 = vset.pattern.permute.xlu0 0
    %122 = vperm.xlu0 %121, %v76
    %v123 = vpop.permute.xlu0 %122
    %126 = vset.pattern.permute.xlu0 0
    %127 = vperm.xlu0 %126, %v77
    %v128 = vpop.permute.xlu0 %127
    %131 = vset.pattern.permute.xlu0 0
    %132 = vperm.xlu0 %131, %v78
    %v133 = vpop.permute.xlu0 %132
    %136 = vset.pattern.permute.xlu0 0
    %137 = vperm.xlu0 %136, %v79
    %v138 = vpop.permute.xlu0 %137
    %141 = vset.pattern.permute.xlu0 0
    %142 = vperm.xlu0 %141, %v80
    %v143 = vpop.permute.xlu0 %142
    %146 = vset.pattern.permute.xlu0 0
    %147 = vperm.xlu0 %146, %v81
    %v148 = vpop.permute.xlu0 %147
    %151 = vset.pattern.permute.xlu0 0
    %152 = vperm.xlu0 %151, %v82
    %v153 = vpop.permute.xlu0 %152
    %156 = vset.pattern.permute.xlu0 0
    %157 = vperm.xlu0 %156, %v83
    %v158 = vpop.permute.xlu0 %157
    %161 = vset.pattern.permute.xlu0 0
    %162 = vperm.xlu0 %161, %v84
    %v163 = vpop.permute.xlu0 %162
    %vm165 = vcmask 130048
    %v167 = vsel %vm165, %v61, 0
    %v170 = vsel %vm165, %v62, 0
    %v173 = vsel %vm165, %v63, 0
    %v176 = vsel %vm165, %v64, 0
    %v179 = vsel %vm165, %v65, 0
    %v182 = vsel %vm165, %v66, 0
    %v185 = vsel %vm165, %v67, 0
    %v188 = vsel %vm165, %v68, 0
    %190 = vmatprep.subr.bf16.mxu0 0
    %191 = vmatpush1.bf16.msra.mxu0 0
    %192 = vmatprep.subr.bf16.mxu0 0
    %193 = vmatpush1.bf16.msra.mxu0 0
    %194 = vmatprep.subr.bf16.mxu0 0
    %195 = vmatpush1.bf16.msra.mxu0 0
    %196 = vmatprep.subr.bf16.mxu0 0
    %197 = vmatpush1.bf16.msra.mxu0 0
    %198 = vmatprep.subr.bf16.mxu0 0
    %199 = vmatpush1.bf16.msra.mxu0 0
    %200 = vmatprep.subr.bf16.mxu0 0
    %201 = vmatpush1.bf16.msra.mxu0 0
    %202 = vmatprep.subr.bf16.mxu0 0
    %203 = vmatpush1.bf16.msra.mxu0 0
    %204 = vmatprep.subr.bf16.mxu0 0
    %205 = vmatpush1.bf16.msra.mxu0 %v44
    %206 = vmatprep.subr.bf16.mxu0 0
    %207 = vmatpush2.bf16.msra.mxu0 0
    %208 = vmatprep.subr.bf16.mxu0 0
    %209 = vmatpush2.bf16.msra.mxu0 0
    %210 = vmatprep.subr.bf16.mxu0 0
    %211 = vmatpush2.bf16.msra.mxu0 0
    %212 = vmatprep.subr.bf16.mxu0 0
    %213 = vmatpush2.bf16.msra.mxu0 0
    %214 = vmatprep.subr.bf16.mxu0 0
    %215 = vmatpush2.bf16.msra.mxu0 0
    %216 = vmatprep.subr.bf16.mxu0 0
    %217 = vmatpush2.bf16.msra.mxu0 0
    %218 = vmatprep.subr.bf16.mxu0 0
    %219 = vmatpush2.bf16.msra.mxu0 0
    %220 = vmatprep.subr.bf16.mxu0 0
    %221 = vmatpush2.bf16.msra.mxu0 0
    %222 = vmatprep.mubr.bf16.mxu0 0
    %223 = vmatmul.mubr.bf16.gmra.mxu0 %v167
    %v224 = vpop.f32.mrf.mxu0
    %v225 = vadd.f32 %v88, %v224
    %v226 = vpop.f32.mrf.mxu0
    %v227 = vpop.f32.mrf.mxu0
    %v228 = vadd.f32 %v93, %v227
    %v229 = vpop.f32.mrf.mxu0
    %230 = vmatprep.mubr.bf16.mxu0 0
    %231 = vmatmul.mubr.bf16.gmra.mxu0 %v170
    %v232 = vpop.f32.mrf.mxu0
    %v233 = vadd.f32 %v98, %v232
    %v234 = vpop.f32.mrf.mxu0
    %v235 = vpop.f32.mrf.mxu0
    %v236 = vadd.f32 %v103, %v235
    %v237 = vpop.f32.mrf.mxu0
    %238 = vmatprep.mubr.bf16.mxu0 0
    %239 = vmatmul.mubr.bf16.gmra.mxu0 %v173
    %v240 = vpop.f32.mrf.mxu0
    %v241 = vadd.f32 %v108, %v240
    %v242 = vpop.f32.mrf.mxu0
    %v243 = vpop.f32.mrf.mxu0
    %v244 = vadd.f32 %v113, %v243
    %v245 = vpop.f32.mrf.mxu0
    %246 = vmatprep.mubr.bf16.mxu0 0
    %247 = vmatmul.mubr.bf16.gmra.mxu0 %v176
    %v248 = vpop.f32.mrf.mxu0
    %v249 = vadd.f32 %v118, %v248
    %v250 = vpop.f32.mrf.mxu0
    %v251 = vpop.f32.mrf.mxu0
    %v252 = vadd.f32 %v123, %v251
    %v253 = vpop.f32.mrf.mxu0
    %254 = vmatprep.mubr.bf16.mxu0 0
    %255 = vmatmul.mubr.bf16.gmra.mxu0 %v179
    %v256 = vpop.f32.mrf.mxu0
    %v257 = vadd.f32 %v128, %v256
    %v258 = vpop.f32.mrf.mxu0
    %v259 = vpop.f32.mrf.mxu0
    %v260 = vadd.f32 %v133, %v259
    %v261 = vpop.f32.mrf.mxu0
    %262 = vmatprep.mubr.bf16.mxu0 0
    %263 = vmatmul.mubr.bf16.gmra.mxu0 %v182
    %v264 = vpop.f32.mrf.mxu0
    %v265 = vadd.f32 %v138, %v264
    %v266 = vpop.f32.mrf.mxu0
    %v267 = vpop.f32.mrf.mxu0
    %v268 = vadd.f32 %v143, %v267
    %v269 = vpop.f32.mrf.mxu0
    %270 = vmatprep.mubr.bf16.mxu0 0
    %271 = vmatmul.mubr.bf16.gmra.mxu0 %v185
    %v272 = vpop.f32.mrf.mxu0
    %v273 = vadd.f32 %v148, %v272
    %v274 = vpop.f32.mrf.mxu0
    %v275 = vpop.f32.mrf.mxu0
    %v276 = vadd.f32 %v153, %v275
    %v277 = vpop.f32.mrf.mxu0
    %278 = vmatprep.mubr.bf16.mxu0 0
    %279 = vmatmul.mubr.bf16.gmra.mxu0 %v188
    %v280 = vpop.f32.mrf.mxu0
    %v281 = vadd.f32 %v158, %v280
    %v282 = vpop.f32.mrf.mxu0
    %v283 = vpop.f32.mrf.mxu0
    %v284 = vadd.f32 %v163, %v283
    %v285 = vpop.f32.mrf.mxu0
    %286 = vdwg.mxu0
    %v287 = vmax.f32 %v225, 0.0
    %v288 = vmax.f32 %v228, 0.0
    %v289 = vmax.f32 %v233, 0.0
    %v290 = vmax.f32 %v236, 0.0
    %v291 = vmax.f32 %v241, 0.0
    %v292 = vmax.f32 %v244, 0.0
    %v293 = vmax.f32 %v249, 0.0
    %v294 = vmax.f32 %v252, 0.0
    %v295 = vmax.f32 %v257, 0.0
    %v296 = vmax.f32 %v260, 0.0
    %v297 = vmax.f32 %v265, 0.0
    %v298 = vmax.f32 %v268, 0.0
    %v299 = vmax.f32 %v273, 0.0
    %v300 = vmax.f32 %v276, 0.0
    %v301 = vmax.f32 %v281, 0.0
    %v302 = vmax.f32 %v284, 0.0
    %v303 = vld [vmem:[%s3] sm:$0xff]
    %v304 = vld [vmem:[%s3 + $0x8] sm:$0xff]
    %v305 = vld [vmem:[%s3 + $0x10] sm:$0xff]
    %v306 = vld [vmem:[%s3 + $0x18] sm:$0xff]
    %v307 = vld [vmem:[%s3 + $0x20] sm:$0xff]
    %v308 = vld [vmem:[%s3 + $0x28] sm:$0xff]
    %v309 = vld [vmem:[%s3 + $0x30] sm:$0xff]
    %v310 = vld [vmem:[%s3 + $0x38] sm:$0xff]
    %v311 = vpack.c.bf16 %v304, %v303
    %v312 = vpack.c.bf16 %v306, %v305
    %v313 = vpack.c.bf16 %v308, %v307
    %v314 = vpack.c.bf16 %v310, %v309
    %v315 = vpack.c.bf16 %v288, %v287
    %v316 = vpack.c.bf16 %v290, %v289
    %v317 = vpack.c.bf16 %v292, %v291
    %v318 = vpack.c.bf16 %v294, %v293
    %v319 = vpack.c.bf16 %v296, %v295
    %v320 = vpack.c.bf16 %v298, %v297
    %v321 = vpack.c.bf16 %v300, %v299
    %v322 = vpack.c.bf16 %v302, %v301
    %v323 = vld [vmem:[%s4] sm:$0xff]
    %v324 = vld [vmem:[%s4 + $0x8] sm:$0xff]
    %v325 = vld [vmem:[%s4 + $0x10] sm:$0xff]
    %v326 = vld [vmem:[%s4 + $0x18] sm:$0xff]
    %v327 = vld [vmem:[%s4 + $0x20] sm:$0xff]
    %v328 = vld [vmem:[%s4 + $0x28] sm:$0xff]
    %v329 = vld [vmem:[%s4 + $0x30] sm:$0xff]
    %v330 = vld [vmem:[%s4 + $0x38] sm:$0xff]
    %332 = vset.pattern.permute.xlu0 0
    %333 = vperm.xlu0 %332, %v323
    %v334 = vpop.permute.xlu0 %333
    %337 = vset.pattern.permute.xlu0 0
    %338 = vperm.xlu0 %337, %v324
    %v339 = vpop.permute.xlu0 %338
    %342 = vset.pattern.permute.xlu0 0
    %343 = vperm.xlu0 %342, %v325
    %v344 = vpop.permute.xlu0 %343
    %347 = vset.pattern.permute.xlu0 0
    %348 = vperm.xlu0 %347, %v326
    %v349 = vpop.permute.xlu0 %348
    %352 = vset.pattern.permute.xlu0 0
    %353 = vperm.xlu0 %352, %v327
    %v354 = vpop.permute.xlu0 %353
    %357 = vset.pattern.permute.xlu0 0
    %358 = vperm.xlu0 %357, %v328
    %v359 = vpop.permute.xlu0 %358
    %362 = vset.pattern.permute.xlu0 0
    %363 = vperm.xlu0 %362, %v329
    %v364 = vpop.permute.xlu0 %363
    %367 = vset.pattern.permute.xlu0 0
    %368 = vperm.xlu0 %367, %v330
    %v369 = vpop.permute.xlu0 %368
    %371 = vmatprep.subr.bf16.mxu0 0
    %372 = vmatpush1.bf16.msra.mxu0 %v322
    %373 = vmatprep.subr.bf16.mxu0 0
    %374 = vmatpush1.bf16.msra.mxu0 %v321
    %375 = vmatprep.subr.bf16.mxu0 0
    %376 = vmatpush1.bf16.msra.mxu0 %v320
    %377 = vmatprep.subr.bf16.mxu0 0
    %378 = vmatpush1.bf16.msra.mxu0 %v319
    %379 = vmatprep.subr.bf16.mxu0 0
    %380 = vmatpush1.bf16.msra.mxu0 %v318
    %381 = vmatprep.subr.bf16.mxu0 0
    %382 = vmatpush1.bf16.msra.mxu0 %v317
    %383 = vmatprep.subr.bf16.mxu0 0
    %384 = vmatpush1.bf16.msra.mxu0 %v316
    %385 = vmatprep.subr.bf16.mxu0 0
    %386 = vmatpush1.bf16.msra.mxu0 %v315
    %387 = vmatprep.subr.bf16.mxu0 0
    %388 = vmatpush2.bf16.msra.mxu0 0
    %389 = vmatprep.subr.bf16.mxu0 0
    %390 = vmatpush2.bf16.msra.mxu0 0
    %391 = vmatprep.subr.bf16.mxu0 0
    %392 = vmatpush2.bf16.msra.mxu0 0
    %393 = vmatprep.subr.bf16.mxu0 0
    %394 = vmatpush2.bf16.msra.mxu0 0
    %395 = vmatprep.subr.bf16.mxu0 0
    %396 = vmatpush2.bf16.msra.mxu0 0
    %397 = vmatprep.subr.bf16.mxu0 0
    %398 = vmatpush2.bf16.msra.mxu0 0
    %399 = vmatprep.subr.bf16.mxu0 0
    %400 = vmatpush2.bf16.msra.mxu0 0
    %401 = vmatprep.subr.bf16.mxu0 0
    %402 = vmatpush2.bf16.msra.mxu0 0
    %403 = vmatprep.mubr.bf16.mxu0 0
    %404 = vmatmul.mubr.bf16.gmra.mxu0 %v311
    %v405 = vpop.f32.mrf.mxu0
    %v406 = vadd.f32 %v334, %v405
    %v407 = vpop.f32.mrf.mxu0
    %v408 = vpop.f32.mrf.mxu0
    %v409 = vadd.f32 %v339, %v408
    %v410 = vpop.f32.mrf.mxu0
    %411 = vmatprep.mubr.bf16.mxu0 0
    %412 = vmatmul.mubr.bf16.gmra.mxu0 %v312
    %v413 = vpop.f32.mrf.mxu0
    %v414 = vadd.f32 %v344, %v413
    %v415 = vpop.f32.mrf.mxu0
    %v416 = vpop.f32.mrf.mxu0
    %v417 = vadd.f32 %v349, %v416
    %v418 = vpop.f32.mrf.mxu0
    %419 = vmatprep.mubr.bf16.mxu0 0
    %420 = vmatmul.mubr.bf16.gmra.mxu0 %v313
    %v421 = vpop.f32.mrf.mxu0
    %v422 = vadd.f32 %v354, %v421
    %v423 = vpop.f32.mrf.mxu0
    %v424 = vpop.f32.mrf.mxu0
    %v425 = vadd.f32 %v359, %v424
    %v426 = vpop.f32.mrf.mxu0
    %427 = vmatprep.mubr.bf16.mxu0 0
    %428 = vmatmul.mubr.bf16.gmra.mxu0 %v314
    %v429 = vpop.f32.mrf.mxu0
    %v430 = vadd.f32 %v364, %v429
    %v431 = vpop.f32.mrf.mxu0
    %v432 = vpop.f32.mrf.mxu0
    %v433 = vadd.f32 %v369, %v432
    %v434 = vpop.f32.mrf.mxu0
    %435 = vdwg.mxu0
    %v436 = vmax.f32 %v406, 0.0
    %v437 = vmax.f32 %v409, 0.0
    %v438 = vmax.f32 %v414, 0.0
    %v439 = vmax.f32 %v417, 0.0
    %v440 = vmax.f32 %v422, 0.0
    %v441 = vmax.f32 %v425, 0.0
    %v442 = vmax.f32 %v430, 0.0
    %v443 = vmax.f32 %v433, 0.0
    %v444 = vld [vmem:[%s5] sm:$0xff]
    %v445 = vld [vmem:[%s5 + $0x8] sm:$0xff]
    %v446 = vld [vmem:[%s5 + $0x10] sm:$0xff]
    %v447 = vld [vmem:[%s5 + $0x18] sm:$0xff]
    %v448 = vpack.c.bf16 %v445, %v444
    %v449 = vpack.c.bf16 %v447, %v446
    %v450 = vpack.c.bf16 %v437, %v436
    %v451 = vpack.c.bf16 %v439, %v438
    %v452 = vpack.c.bf16 %v441, %v440
    %v453 = vpack.c.bf16 %v443, %v442
    %v454 = vld [vmem:[%s6] sm:$0xff]
    %v455 = vld [vmem:[%s6 + $0x8] sm:$0xff]
    %v456 = vld [vmem:[%s6 + $0x10] sm:$0xff]
    %v457 = vld [vmem:[%s6 + $0x18] sm:$0xff]
    %459 = vset.pattern.permute.xlu0 0
    %460 = vperm.xlu0 %459, %v454
    %v461 = vpop.permute.xlu0 %460
    %464 = vset.pattern.permute.xlu0 0
    %465 = vperm.xlu0 %464, %v455
    %v466 = vpop.permute.xlu0 %465
    %469 = vset.pattern.permute.xlu0 0
    %470 = vperm.xlu0 %469, %v456
    %v471 = vpop.permute.xlu0 %470
    %474 = vset.pattern.permute.xlu0 0
    %475 = vperm.xlu0 %474, %v457
    %v476 = vpop.permute.xlu0 %475
    %vm478 = vcmask 523264
    %v480 = vsel %vm478, %v448, 0
    %v483 = vsel %vm478, %v449, 0
    %485 = vmatprep.subr.bf16.mxu0 0
    %486 = vmatpush1.bf16.msra.mxu0 0
    %487 = vmatprep.subr.bf16.mxu0 0
    %488 = vmatpush1.bf16.msra.mxu0 0
    %489 = vmatprep.subr.bf16.mxu0 0
    %490 = vmatpush1.bf16.msra.mxu0 0
    %491 = vmatprep.subr.bf16.mxu0 0
    %492 = vmatpush1.bf16.msra.mxu0 0
    %493 = vmatprep.subr.bf16.mxu0 0
    %494 = vmatpush1.bf16.msra.mxu0 %v453
    %495 = vmatprep.subr.bf16.mxu0 0
    %496 = vmatpush1.bf16.msra.mxu0 %v452
    %497 = vmatprep.subr.bf16.mxu0 0
    %498 = vmatpush1.bf16.msra.mxu0 %v451
    %499 = vmatprep.subr.bf16.mxu0 0
    %500 = vmatpush1.bf16.msra.mxu0 %v450
    %501 = vmatprep.subr.bf16.mxu0 0
    %502 = vmatpush2.bf16.msra.mxu0 0
    %503 = vmatprep.subr.bf16.mxu0 0
    %504 = vmatpush2.bf16.msra.mxu0 0
    %505 = vmatprep.subr.bf16.mxu0 0
    %506 = vmatpush2.bf16.msra.mxu0 0
    %507 = vmatprep.subr.bf16.mxu0 0
    %508 = vmatpush2.bf16.msra.mxu0 0
    %509 = vmatprep.subr.bf16.mxu0 0
    %510 = vmatpush2.bf16.msra.mxu0 0
    %511 = vmatprep.subr.bf16.mxu0 0
    %512 = vmatpush2.bf16.msra.mxu0 0
    %513 = vmatprep.subr.bf16.mxu0 0
    %514 = vmatpush2.bf16.msra.mxu0 0
    %515 = vmatprep.subr.bf16.mxu0 0
    %516 = vmatpush2.bf16.msra.mxu0 0
    %517 = vmatprep.mubr.bf16.mxu0 0
    %518 = vmatmul.mubr.bf16.gmra.mxu0 %v480
    %v519 = vpop.f32.mrf.mxu0
    %v520 = vadd.f32 %v461, %v519
    %v521 = vpop.f32.mrf.mxu0
    %v522 = vpop.f32.mrf.mxu0
    %v523 = vadd.f32 %v466, %v522
    %v524 = vpop.f32.mrf.mxu0
    %525 = vmatprep.mubr.bf16.mxu0 0
    %526 = vmatmul.mubr.bf16.gmra.mxu0 %v483
    %v527 = vpop.f32.mrf.mxu0
    %v528 = vadd.f32 %v471, %v527
    %v529 = vpop.f32.mrf.mxu0
    %v530 = vpop.f32.mrf.mxu0
    %v531 = vadd.f32 %v476, %v530
    %v532 = vpop.f32.mrf.mxu0
    %533 = vdwg.mxu0
    %v534 = vmax.f32 %v520, 0.0
    %v535 = vmax.f32 %v523, 0.0
    %v536 = vmax.f32 %v528, 0.0
    %v537 = vmax.f32 %v531, 0.0
    %v538 = vld [vmem:[%s7] sm:$0xff]
    %v539 = vld [vmem:[%s7 + $0x8] sm:$0xff]
    %v540 = vpack.c.bf16 %v539, %v538
    %v541 = vpack.c.bf16 %v535, %v534
    %v542 = vpack.c.bf16 %v537, %v536
    %v543 = vld [vmem:[%s8] sm:$0xff]
    %v544 = vld [vmem:[%s8 + $0x8] sm:$0xff]
    %546 = vset.pattern.permute.xlu0 0
    %547 = vperm.xlu0 %546, %v543
    %v548 = vpop.permute.xlu0 %547
    %551 = vset.pattern.permute.xlu0 0
    %552 = vperm.xlu0 %551, %v544
    %v553 = vpop.permute.xlu0 %552
    %vm555 = vcmask 261120
    %v557 = vsel %vm555, %v540, 0
    %559 = vmatprep.subr.bf16.mxu0 0
    %560 = vmatpush1.bf16.msra.mxu0 0
    %561 = vmatprep.subr.bf16.mxu0 0
    %562 = vmatpush1.bf16.msra.mxu0 0
    %563 = vmatprep.subr.bf16.mxu0 0
    %564 = vmatpush1.bf16.msra.mxu0 0
    %565 = vmatprep.subr.bf16.mxu0 0
    %566 = vmatpush1.bf16.msra.mxu0 0
    %567 = vmatprep.subr.bf16.mxu0 0
    %568 = vmatpush1.bf16.msra.mxu0 0
    %569 = vmatprep.subr.bf16.mxu0 0
    %570 = vmatpush1.bf16.msra.mxu0 0
    %571 = vmatprep.subr.bf16.mxu0 0
    %572 = vmatpush1.bf16.msra.mxu0 %v542
    %573 = vmatprep.subr.bf16.mxu0 0
    %574 = vmatpush1.bf16.msra.mxu0 %v541
    %575 = vmatprep.subr.bf16.mxu0 0
    %576 = vmatpush2.bf16.msra.mxu0 0
    %577 = vmatprep.subr.bf16.mxu0 0
    %578 = vmatpush2.bf16.msra.mxu0 0
    %579 = vmatprep.subr.bf16.mxu0 0
    %580 = vmatpush2.bf16.msra.mxu0 0
    %581 = vmatprep.subr.bf16.mxu0 0
    %582 = vmatpush2.bf16.msra.mxu0 0
    %583 = vmatprep.subr.bf16.mxu0 0
    %584 = vmatpush2.bf16.msra.mxu0 0
    %585 = vmatprep.subr.bf16.mxu0 0
    %586 = vmatpush2.bf16.msra.mxu0 0
    %587 = vmatprep.subr.bf16.mxu0 0
    %588 = vmatpush2.bf16.msra.mxu0 0
    %589 = vmatprep.subr.bf16.mxu0 0
    %590 = vmatpush2.bf16.msra.mxu0 0
    %591 = vmatprep.mubr.bf16.mxu0 0
    %592 = vmatmul.mubr.bf16.gmra.mxu0 %v557
    %v593 = vpop.f32.mrf.mxu0
    %v594 = vadd.f32 %v548, %v593
    %v595 = vpop.f32.mrf.mxu0
    %v596 = vpop.f32.mrf.mxu0
    %v597 = vadd.f32 %v553, %v596
    %v598 = vpop.f32.mrf.mxu0
    %599 = vdwg.mxu0
    %v600 = vmax.f32 %v594, 0.0
    %v601 = vmax.f32 %v597, 0.0
    %v602 = vld [vmem:[%s9] sm:$0xff]
    %v603 = vld [vmem:[%s9 + $0x8] sm:$0xff]
    %605 = vset.pattern.permute.xlu0 0
    %606 = vperm.xlu0 %605, %v602
    %v607 = vpop.permute.xlu0 %606
    %610 = vset.pattern.permute.xlu0 0
    %611 = vperm.xlu0 %610, %v603
    %v612 = vpop.permute.xlu0 %611
    %v614 = vmul.f32 %v607, %v600
    %v615 = vmul.f32 %v612, %v601
    %v616 = vadd.f32 %v614, %v615
    %v617 = vrot.slane %v616, 4
    %v618 = vadd.f32 %v616, %v617
    %v619 = vrot.slane %v618, 2
    %v620 = vadd.f32 %v618, %v619
    %v621 = vrot.slane %v620, 1
    %v622 = vadd.f32 %v620, %v621
    %v623 = vld [vmem:[#allocation2] sm:$0x1]
    %625 = vset.pattern.permute.xlu0 0
    %626 = vperm.xlu0 %625, %v623
    %v627 = vpop.permute.xlu0 %626
    %v629 = vlaneseq
    %v630 = vshrl.u32 %v629, 7
    %v631 = vsub.s32 0, %v630
    %v632 = vrot.slane %v627, %v631
    %v633 = vadd.f32 %v622, %v632
    %634 = vst [vmem:[#allocation3] sm:$0x1] %v633
    // Predicated region
    $region46: #{tpu_custom_call.1} parent=1 // pred_check
      _
    $region47: #{tpu_custom_call.1} parent=1 // pred_check_branch
      %636 = sbr.rel (0) target = $region49
    $region48: #{tpu_custom_call.1} parent=1 // pred_region
      %s638 = ssub.s32 16, 16
      %639 = vsyncadd [#allocation4], %s638
      %s641 = sshll.u32 [#allocation3], 4
      %s642 = int_to_ptr.vmem [resolvable:$true] %s641
      %644 = dma.vmem_to_hbm [thread:$0]  %s642, 16, %s11, [#allocation4]
    $region49: #{tpu_custom_call.1} parent=1 // pred_fallthru
      _
    // Predicated region
    $region50: #{tpu_custom_call.1} parent=1 // pred_check
      _
    $region51: #{tpu_custom_call.1} parent=1 // pred_check_branch
      %646 = sbr.rel (0) target = $region53
    $region52: #{tpu_custom_call.1} parent=1 // pred_region
      %647 = dma.done [#allocation4], 16
    $region53: #{tpu_custom_call.1} parent=1 // pred_fallthru
      _
    %648 = vsyncpa [#allocation4], 1

</llo_original>
